<compile_context>
chip_gen: v5e
topology: v5e:2x2
jax: 0.10.0
libtpu: 0.0.40
codegen_flags: <defaults>
</compile_context>

<pallas_src>
import functools

import jax
import jax.numpy as jnp
from jax.experimental import pallas as pl
from jax.experimental.pallas import tpu as pltpu


# ----------------------------------------------------------------------------- helpers

def _tpu_vmem_capacity_bytes():
    """Physical VMEM per core; conservative fallback if the query is unavailable."""
    try:
        return int(pltpu.get_tpu_info().vmem_capacity_bytes)
    except Exception:
        pass
    try:
        kind = jax.devices()[0].device_kind.lower()
    except Exception:
        kind = ""
    if any(t in kind for t in ("v4", "v5", "v6")):
        return 128 << 20
    return 64 << 20  # conservative default (covers v7x's 64 MiB)


def _supports_bf16_valu():
    """v6e/v7x VPUs execute bf16; v5e and older do not."""
    try:
        kind = jax.devices()[0].device_kind.lower()
    except Exception:
        return False
    return not any(t in kind for t in ("v2", "v3", "v4", "v5"))


def _pick_batch_tile(B, tb_budget):
    """Largest divisor of B that is a multiple of 8 (or B itself) within the budget."""
    cap = max(8, min(int(tb_budget), 512))
    if B <= cap:
        return B
    for cand in range(cap, 7, -1):
        if B % cand == 0 and cand % 8 == 0:
            return cand
    return B  # no clean divisor: full-batch block is always layout-legal


def _squash_last(s):
    # squash over last axis; s * ||s|| / (1+||s||^2)  (== PyTorch form; 0 instead of NaN at ||s||=0)
    sq = jnp.sum(s * s, axis=-1, keepdims=True)           # (TB, 1)
    return s * (jnp.sqrt(sq) / (1.0 + sq))                # divide only on (TB, 1)


# ------------------------------------------------------------------------------ kernel

def _capsule_routing_kernel(x_ref, w_ref, out_ref, *, num_iterations, r_on_lanes,
                            mul_dtype):
    # r_on_lanes=True : x_ref (TB, Cin, R), w_ref (1, Cin, Cout, R), priors (TB, Cout, R)
    # r_on_lanes=False: x_ref (TB, R, Cin), w_ref (1, R, Cin, Cout), priors (TB, R, Cout)
    if r_on_lanes:
        tb, cin, r = x_ref.shape
        r_axis, o_axis = 2, 1
    else:
        tb, r, cin = x_ref.shape
        r_axis, o_axis = 1, 2

    xt = x_ref[...].astype(mul_dtype)
    wt = w_ref[0].astype(mul_dtype)

    # priors[b, o, r] (or [b, r, o]) = sum_c x[b,r,c] * w[r,c,o]
    # VPU broadcast-FMA, Cin unrolled (tiny K -> MXU would pay fill/drain for nothing).
    # Products in mul_dtype (bf16 on v6e/v7x), accumulation in f32.
    def term(c):
        if r_on_lanes:
            return xt[:, c, :][:, None, :] * wt[c][None, :, :]        # (TB, Cout, R)
        return xt[:, :, c][:, :, None] * wt[:, c, :][None, :, :]      # (TB, R, Cout)

    priors = term(0).astype(jnp.float32)
    for c in range(1, cin):
        priors = priors + term(c).astype(jnp.float32)

    def expand_r(v):   # (TB, R) -> broadcastable against priors
        return v[:, None, :] if r_on_lanes else v[:, :, None]

    def expand_o(v):   # (TB, Cout) -> broadcastable against priors
        return v[:, :, None] if r_on_lanes else v[:, None, :]

    inv_r = jnp.float32(1.0 / r)

    # --- iteration 0: logits are all zero -> softmax over route nodes is exactly uniform.
    s = jnp.sum(priors, axis=r_axis) * inv_r               # (TB, Cout)
    outputs = _squash_last(s)

    # logits never carry the Cout axis (delta is constant along Cout in the module).
    logits = jnp.zeros((tb, r), jnp.float32)               # (TB, R)
    for _ in range(1, num_iterations):
        # delta[b, r] = sum_o priors * outputs
        delta = jnp.sum(priors * expand_o(outputs), axis=o_axis)      # (TB, R)
        logits = logits + delta
        # softmax over route nodes
        m = jnp.max(logits, axis=-1, keepdims=True)                   # (TB, 1)
        e = jnp.exp(logits - m)                                       # (TB, R)
        denom = jnp.sum(e, axis=-1, keepdims=True)                    # (TB, 1)
        probs = e / denom          # exact; tiny vectors, accuracy-bound (EUP approx optional)
        s = jnp.sum(priors * expand_r(probs), axis=r_axis)            # (TB, Cout)
        outputs = _squash_last(s)

    out_ref[0] = outputs.astype(out_ref.dtype)


# ----------------------------------------------------------------------------- wrapper

def capsule_layer_forward(x, route_weights, num_iterations=2, batch_tile=None,
                          w_prelaned=None):
    """Pallas forward for CapsuleLayer (routing branch).

    x: (B, R, Cin), route_weights: (N, R, Cin, Cout)
    Returns (N, B, 1, 1, Cout), matching the PyTorch module.

    w_prelaned: optional cached `jnp.transpose(route_weights, (0, 2, 3, 1))` for the
    large-R (lane-dense-R) layout; pre-compute at parameter-load time to avoid paying
    the transpose on every forward.  Ignored for the small-R layout (natural layout).
    """
    B, R, Cin = x.shape
    N, R2, Cin2, Cout = route_weights.shape
    assert (R, Cin) == (R2, Cin2)

    # ---- layout selection (small-R re-laning): lane-dense R only when R fills lanes.
    r_on_lanes = R >= 128
    if r_on_lanes:
        xL = jnp.swapaxes(x, 1, 2)                                   # (B, Cin, R)
        wL = (w_prelaned if w_prelaned is not None
              else jnp.transpose(route_weights, (0, 2, 3, 1)))       # (N, Cin, Cout, R)
        x_block = lambda tb: (tb, Cin, R)
        w_block = (1, Cin, Cout, R)
    else:
        xL = x                                                       # (B, R, Cin)
        wL = route_weights                                           # (N, R, Cin, Cout)
        x_block = lambda tb: (tb, R, Cin)
        w_block = (1, R, Cin, Cout)

    # ---- compute dtype: keep bf16 operands through the priors FMA on bf16-VALU chips.
    if (x.dtype == jnp.bfloat16 and route_weights.dtype == jnp.bfloat16
            and _supports_bf16_valu()):
        mul_dtype = jnp.bfloat16
    else:
        mul_dtype = jnp.float32

    # ---- generation-aware VMEM budget and batch tiling.
    vmem_phys = _tpu_vmem_capacity_bytes()
    vmem_cap = (vmem_phys * 3) // 4         # headroom: ~48 MiB on v7x, ~96 MiB on v5e/v6e

    itemsize = jnp.dtype(x.dtype).itemsize
    f32b = 4
    if batch_tile is None:
        # Conservative per-batch-row working set: f32 priors + elementwise temps,
        # double-buffered x block rows, routing vectors.
        per_row = 4 * Cout * R * f32b + 2 * Cin * R * itemsize + 8 * (R + Cout) * f32b
        fixed = 2 * Cin * Cout * R * itemsize + (6 << 20)
        tb_budget = max(1, (vmem_cap - fixed) // max(per_row, 1))
        tb = _pick_batch_tile(B, tb_budget)
    else:
        tb = batch_tile
    assert B % tb == 0, (B, tb)

    # Explicit scoped-VMEM limit from the chosen tile, clamped to the physical budget.
    blk_bytes = itemsize * (tb * Cin * R + Cin * Cout * R + tb * Cout)
    work_bytes = f32b * (4 * tb * Cout * R + 8 * tb * (R + Cout))
    vmem_limit = int(min(max(2 * blk_bytes + work_bytes + (4 << 20), 16 << 20), vmem_cap))

    in_specs = [
        # x block indexed only by the outer batch axis -> stays VMEM-resident across
        # the inner capsule axis (no re-streaming of x per capsule).
        pl.BlockSpec(x_block(tb), lambda b, n: (b, 0, 0)),
        # per-capsule weight slab is the streamed block (small).
        pl.BlockSpec(w_block, lambda b, n: (n, 0, 0, 0)),
    ]

    out = pl.pallas_call(
        functools.partial(_capsule_routing_kernel,
                          num_iterations=num_iterations,
                          r_on_lanes=r_on_lanes,
                          mul_dtype=mul_dtype),
        out_shape=jax.ShapeDtypeStruct((N, B, Cout), x.dtype),
        grid_spec=pltpu.PrefetchScalarGridSpec(
            num_scalar_prefetch=0,
            grid=(B // tb, N),                        # (batch tile, capsule)
            in_specs=in_specs,
            out_specs=pl.BlockSpec((1, tb, Cout), lambda b, n: (n, b, 0)),
        ),
        compiler_params=pltpu.CompilerParams(
            # batch axis sharded across cores; capsule axis "arbitrary" to keep the
            # resident x block revisit semantics per core.
            dimension_semantics=("parallel", "arbitrary"),
            vmem_limit_bytes=vmem_limit,
        ),
    )(xL, wL)

    return out.reshape(N, B, 1, 1, Cout)


# --------------------------------------------------------------------------- reference

def capsule_layer_reference(x, route_weights, num_iterations=2):
    """Plain-JAX transcription of the PyTorch forward (routing branch)."""
    # priors: (N, B, R, 1, Cout)
    priors = jnp.einsum("brc,nrco->nbro", x, route_weights)[:, :, :, None, :]
    logits = jnp.zeros_like(priors)
    outputs = None
    for i in range(num_iterations):
        probs = jax.nn.softmax(logits, axis=2)
        s = jnp.sum(probs * priors, axis=2, keepdims=True)           # (N, B, 1, 1, Cout)
        sq = jnp.sum(s * s, axis=-1, keepdims=True)
        outputs = (sq / (1.0 + sq)) * s / jnp.sqrt(sq)
        if i != num_iterations - 1:
            logits = logits + jnp.sum(priors * outputs, axis=-1, keepdims=True)
    return outputs                                                    # (N, B, 1, 1, Cout)


if __name__ == "__main__":
    # Small, module-consistent shapes.
    num_capsules = 4     # N
    num_route_nodes = 8  # R
    in_channels = 16     # Cin
    out_channels = 32    # Cout
    batch = 2            # B
    num_iterations = 2

    key = jax.random.PRNGKey(0)
    kx, kw = jax.random.split(key)
    x = jax.random.normal(kx, (batch, num_route_nodes, in_channels), jnp.float32)
    route_weights = jax.random.normal(
        kw, (num_capsules, num_route_nodes, in_channels, out_channels), jnp.float32
    )

    out = capsule_layer_forward(x, route_weights, num_iterations=num_iterations)
    out = jax.block_until_ready(out)

    ref = capsule_layer_reference(x, route_weights, num_iterations)
    assert out.shape == (num_capsules, batch, 1, 1, out_channels), out.shape
    max_err = float(jnp.max(jnp.abs(out - ref)))
    assert jnp.allclose(out, ref, rtol=1e-4, atol=1e-4), max_err

    print("KERNEL_OK")
</pallas_src>

<mosaic_0001>
module attributes {stable_mosaic.version = 11 : i64} {
  func.func @_capsule_routing_kernel(%arg0: i32, %arg1: i32, %arg2: memref<2x8x16xf32, #tpu.memory_space<vmem>>, %arg3: memref<1x8x16x32xf32, #tpu.memory_space<vmem>>, %arg4: memref<1x2x32xf32, #tpu.memory_space<vmem>>) attributes {dimension_semantics = [#tpu.dimension_semantics<parallel>, #tpu.dimension_semantics<arbitrary>], iteration_bounds = array<i64: 1, 4>, scalar_prefetch = 0 : i64, scratch_operands = 0 : i64, tpu.core_type = #tpu.core_type<tc>, window_params = [{transform_indices = @transform_0, window_bounds = array<i64: 2, 8, 16>}, {transform_indices = @transform_1, window_bounds = array<i64: 1, 8, 16, 32>}, {transform_indices = @transform_2, window_bounds = array<i64: 1, 2, 32>}]} {
    %c0 = arith.constant 0 : index
    %c0_0 = arith.constant 0 : index
    %c0_1 = arith.constant 0 : index
    %0 = vector.load %arg2[%c0, %c0_0, %c0_1] : memref<2x8x16xf32, #tpu.memory_space<vmem>>, vector<2x8x16xf32>
    %c0_2 = arith.constant 0 : index
    %c0_3 = arith.constant 0 : index
    %c0_4 = arith.constant 0 : index
    %c0_5 = arith.constant 0 : index
    %1 = vector.load %arg3[%c0_2, %c0_3, %c0_4, %c0_5] : memref<1x8x16x32xf32, #tpu.memory_space<vmem>>, vector<1x8x16x32xf32>
    %2 = vector.shape_cast %1 : vector<1x8x16x32xf32> to vector<8x16x32xf32>
    %3 = vector.extract_strided_slice %0 {offsets = [0, 0, 0], sizes = [2, 8, 1], strides = [1, 1, 1]} : vector<2x8x16xf32> to vector<2x8x1xf32>
    %4 = vector.shape_cast %3 : vector<2x8x1xf32> to vector<2x8xf32>
    %5 = vector.shape_cast %4 : vector<2x8xf32> to vector<2x8x1xf32>
    %6 = vector.extract_strided_slice %2 {offsets = [0, 0, 0], sizes = [8, 1, 32], strides = [1, 1, 1]} : vector<8x16x32xf32> to vector<8x1x32xf32>
    %7 = vector.shape_cast %6 : vector<8x1x32xf32> to vector<8x32xf32>
    %8 = vector.shape_cast %7 : vector<8x32xf32> to vector<1x8x32xf32>
    %9 = vector.broadcast %5 : vector<2x8x1xf32> to vector<2x8x32xf32>
    %10 = vector.broadcast %8 : vector<1x8x32xf32> to vector<2x8x32xf32>
    %11 = arith.mulf %9, %10 : vector<2x8x32xf32>
    %12 = vector.extract_strided_slice %0 {offsets = [0, 0, 1], sizes = [2, 8, 1], strides = [1, 1, 1]} : vector<2x8x16xf32> to vector<2x8x1xf32>
    %13 = vector.shape_cast %12 : vector<2x8x1xf32> to vector<2x8xf32>
    %14 = vector.shape_cast %13 : vector<2x8xf32> to vector<2x8x1xf32>
    %15 = vector.extract_strided_slice %2 {offsets = [0, 1, 0], sizes = [8, 1, 32], strides = [1, 1, 1]} : vector<8x16x32xf32> to vector<8x1x32xf32>
    %16 = vector.shape_cast %15 : vector<8x1x32xf32> to vector<8x32xf32>
    %17 = vector.shape_cast %16 : vector<8x32xf32> to vector<1x8x32xf32>
    %18 = vector.broadcast %14 : vector<2x8x1xf32> to vector<2x8x32xf32>
    %19 = vector.broadcast %17 : vector<1x8x32xf32> to vector<2x8x32xf32>
    %20 = arith.mulf %18, %19 : vector<2x8x32xf32>
    %21 = arith.addf %11, %20 : vector<2x8x32xf32>
    %22 = vector.extract_strided_slice %0 {offsets = [0, 0, 2], sizes = [2, 8, 1], strides = [1, 1, 1]} : vector<2x8x16xf32> to vector<2x8x1xf32>
    %23 = vector.shape_cast %22 : vector<2x8x1xf32> to vector<2x8xf32>
    %24 = vector.shape_cast %23 : vector<2x8xf32> to vector<2x8x1xf32>
    %25 = vector.extract_strided_slice %2 {offsets = [0, 2, 0], sizes = [8, 1, 32], strides = [1, 1, 1]} : vector<8x16x32xf32> to vector<8x1x32xf32>
    %26 = vector.shape_cast %25 : vector<8x1x32xf32> to vector<8x32xf32>
    %27 = vector.shape_cast %26 : vector<8x32xf32> to vector<1x8x32xf32>
    %28 = vector.broadcast %24 : vector<2x8x1xf32> to vector<2x8x32xf32>
    %29 = vector.broadcast %27 : vector<1x8x32xf32> to vector<2x8x32xf32>
    %30 = arith.mulf %28, %29 : vector<2x8x32xf32>
    %31 = arith.addf %21, %30 : vector<2x8x32xf32>
    %32 = vector.extract_strided_slice %0 {offsets = [0, 0, 3], sizes = [2, 8, 1], strides = [1, 1, 1]} : vector<2x8x16xf32> to vector<2x8x1xf32>
    %33 = vector.shape_cast %32 : vector<2x8x1xf32> to vector<2x8xf32>
    %34 = vector.shape_cast %33 : vector<2x8xf32> to vector<2x8x1xf32>
    %35 = vector.extract_strided_slice %2 {offsets = [0, 3, 0], sizes = [8, 1, 32], strides = [1, 1, 1]} : vector<8x16x32xf32> to vector<8x1x32xf32>
    %36 = vector.shape_cast %35 : vector<8x1x32xf32> to vector<8x32xf32>
    %37 = vector.shape_cast %36 : vector<8x32xf32> to vector<1x8x32xf32>
    %38 = vector.broadcast %34 : vector<2x8x1xf32> to vector<2x8x32xf32>
    %39 = vector.broadcast %37 : vector<1x8x32xf32> to vector<2x8x32xf32>
    %40 = arith.mulf %38, %39 : vector<2x8x32xf32>
    %41 = arith.addf %31, %40 : vector<2x8x32xf32>
    %42 = vector.extract_strided_slice %0 {offsets = [0, 0, 4], sizes = [2, 8, 1], strides = [1, 1, 1]} : vector<2x8x16xf32> to vector<2x8x1xf32>
    %43 = vector.shape_cast %42 : vector<2x8x1xf32> to vector<2x8xf32>
    %44 = vector.shape_cast %43 : vector<2x8xf32> to vector<2x8x1xf32>
    %45 = vector.extract_strided_slice %2 {offsets = [0, 4, 0], sizes = [8, 1, 32], strides = [1, 1, 1]} : vector<8x16x32xf32> to vector<8x1x32xf32>
    %46 = vector.shape_cast %45 : vector<8x1x32xf32> to vector<8x32xf32>
    %47 = vector.shape_cast %46 : vector<8x32xf32> to vector<1x8x32xf32>
    %48 = vector.broadcast %44 : vector<2x8x1xf32> to vector<2x8x32xf32>
    %49 = vector.broadcast %47 : vector<1x8x32xf32> to vector<2x8x32xf32>
    %50 = arith.mulf %48, %49 : vector<2x8x32xf32>
    %51 = arith.addf %41, %50 : vector<2x8x32xf32>
    %52 = vector.extract_strided_slice %0 {offsets = [0, 0, 5], sizes = [2, 8, 1], strides = [1, 1, 1]} : vector<2x8x16xf32> to vector<2x8x1xf32>
    %53 = vector.shape_cast %52 : vector<2x8x1xf32> to vector<2x8xf32>
    %54 = vector.shape_cast %53 : vector<2x8xf32> to vector<2x8x1xf32>
    %55 = vector.extract_strided_slice %2 {offsets = [0, 5, 0], sizes = [8, 1, 32], strides = [1, 1, 1]} : vector<8x16x32xf32> to vector<8x1x32xf32>
    %56 = vector.shape_cast %55 : vector<8x1x32xf32> to vector<8x32xf32>
    %57 = vector.shape_cast %56 : vector<8x32xf32> to vector<1x8x32xf32>
    %58 = vector.broadcast %54 : vector<2x8x1xf32> to vector<2x8x32xf32>
    %59 = vector.broadcast %57 : vector<1x8x32xf32> to vector<2x8x32xf32>
    %60 = arith.mulf %58, %59 : vector<2x8x32xf32>
    %61 = arith.addf %51, %60 : vector<2x8x32xf32>
    %62 = vector.extract_strided_slice %0 {offsets = [0, 0, 6], sizes = [2, 8, 1], strides = [1, 1, 1]} : vector<2x8x16xf32> to vector<2x8x1xf32>
    %63 = vector.shape_cast %62 : vector<2x8x1xf32> to vector<2x8xf32>
    %64 = vector.shape_cast %63 : vector<2x8xf32> to vector<2x8x1xf32>
    %65 = vector.extract_strided_slice %2 {offsets = [0, 6, 0], sizes = [8, 1, 32], strides = [1, 1, 1]} : vector<8x16x32xf32> to vector<8x1x32xf32>
    %66 = vector.shape_cast %65 : vector<8x1x32xf32> to vector<8x32xf32>
    %67 = vector.shape_cast %66 : vector<8x32xf32> to vector<1x8x32xf32>
    %68 = vector.broadcast %64 : vector<2x8x1xf32> to vector<2x8x32xf32>
    %69 = vector.broadcast %67 : vector<1x8x32xf32> to vector<2x8x32xf32>
    %70 = arith.mulf %68, %69 : vector<2x8x32xf32>
    %71 = arith.addf %61, %70 : vector<2x8x32xf32>
    %72 = vector.extract_strided_slice %0 {offsets = [0, 0, 7], sizes = [2, 8, 1], strides = [1, 1, 1]} : vector<2x8x16xf32> to vector<2x8x1xf32>
    %73 = vector.shape_cast %72 : vector<2x8x1xf32> to vector<2x8xf32>
    %74 = vector.shape_cast %73 : vector<2x8xf32> to vector<2x8x1xf32>
    %75 = vector.extract_strided_slice %2 {offsets = [0, 7, 0], sizes = [8, 1, 32], strides = [1, 1, 1]} : vector<8x16x32xf32> to vector<8x1x32xf32>
    %76 = vector.shape_cast %75 : vector<8x1x32xf32> to vector<8x32xf32>
    %77 = vector.shape_cast %76 : vector<8x32xf32> to vector<1x8x32xf32>
    %78 = vector.broadcast %74 : vector<2x8x1xf32> to vector<2x8x32xf32>
    %79 = vector.broadcast %77 : vector<1x8x32xf32> to vector<2x8x32xf32>
    %80 = arith.mulf %78, %79 : vector<2x8x32xf32>
    %81 = arith.addf %71, %80 : vector<2x8x32xf32>
    %82 = vector.extract_strided_slice %0 {offsets = [0, 0, 8], sizes = [2, 8, 1], strides = [1, 1, 1]} : vector<2x8x16xf32> to vector<2x8x1xf32>
    %83 = vector.shape_cast %82 : vector<2x8x1xf32> to vector<2x8xf32>
    %84 = vector.shape_cast %83 : vector<2x8xf32> to vector<2x8x1xf32>
    %85 = vector.extract_strided_slice %2 {offsets = [0, 8, 0], sizes = [8, 1, 32], strides = [1, 1, 1]} : vector<8x16x32xf32> to vector<8x1x32xf32>
    %86 = vector.shape_cast %85 : vector<8x1x32xf32> to vector<8x32xf32>
    %87 = vector.shape_cast %86 : vector<8x32xf32> to vector<1x8x32xf32>
    %88 = vector.broadcast %84 : vector<2x8x1xf32> to vector<2x8x32xf32>
    %89 = vector.broadcast %87 : vector<1x8x32xf32> to vector<2x8x32xf32>
    %90 = arith.mulf %88, %89 : vector<2x8x32xf32>
    %91 = arith.addf %81, %90 : vector<2x8x32xf32>
    %92 = vector.extract_strided_slice %0 {offsets = [0, 0, 9], sizes = [2, 8, 1], strides = [1, 1, 1]} : vector<2x8x16xf32> to vector<2x8x1xf32>
    %93 = vector.shape_cast %92 : vector<2x8x1xf32> to vector<2x8xf32>
    %94 = vector.shape_cast %93 : vector<2x8xf32> to vector<2x8x1xf32>
    %95 = vector.extract_strided_slice %2 {offsets = [0, 9, 0], sizes = [8, 1, 32], strides = [1, 1, 1]} : vector<8x16x32xf32> to vector<8x1x32xf32>
    %96 = vector.shape_cast %95 : vector<8x1x32xf32> to vector<8x32xf32>
    %97 = vector.shape_cast %96 : vector<8x32xf32> to vector<1x8x32xf32>
    %98 = vector.broadcast %94 : vector<2x8x1xf32> to vector<2x8x32xf32>
    %99 = vector.broadcast %97 : vector<1x8x32xf32> to vector<2x8x32xf32>
    %100 = arith.mulf %98, %99 : vector<2x8x32xf32>
    %101 = arith.addf %91, %100 : vector<2x8x32xf32>
    %102 = vector.extract_strided_slice %0 {offsets = [0, 0, 10], sizes = [2, 8, 1], strides = [1, 1, 1]} : vector<2x8x16xf32> to vector<2x8x1xf32>
    %103 = vector.shape_cast %102 : vector<2x8x1xf32> to vector<2x8xf32>
    %104 = vector.shape_cast %103 : vector<2x8xf32> to vector<2x8x1xf32>
    %105 = vector.extract_strided_slice %2 {offsets = [0, 10, 0], sizes = [8, 1, 32], strides = [1, 1, 1]} : vector<8x16x32xf32> to vector<8x1x32xf32>
    %106 = vector.shape_cast %105 : vector<8x1x32xf32> to vector<8x32xf32>
    %107 = vector.shape_cast %106 : vector<8x32xf32> to vector<1x8x32xf32>
    %108 = vector.broadcast %104 : vector<2x8x1xf32> to vector<2x8x32xf32>
    %109 = vector.broadcast %107 : vector<1x8x32xf32> to vector<2x8x32xf32>
    %110 = arith.mulf %108, %109 : vector<2x8x32xf32>
    %111 = arith.addf %101, %110 : vector<2x8x32xf32>
    %112 = vector.extract_strided_slice %0 {offsets = [0, 0, 11], sizes = [2, 8, 1], strides = [1, 1, 1]} : vector<2x8x16xf32> to vector<2x8x1xf32>
    %113 = vector.shape_cast %112 : vector<2x8x1xf32> to vector<2x8xf32>
    %114 = vector.shape_cast %113 : vector<2x8xf32> to vector<2x8x1xf32>
    %115 = vector.extract_strided_slice %2 {offsets = [0, 11, 0], sizes = [8, 1, 32], strides = [1, 1, 1]} : vector<8x16x32xf32> to vector<8x1x32xf32>
    %116 = vector.shape_cast %115 : vector<8x1x32xf32> to vector<8x32xf32>
    %117 = vector.shape_cast %116 : vector<8x32xf32> to vector<1x8x32xf32>
    %118 = vector.broadcast %114 : vector<2x8x1xf32> to vector<2x8x32xf32>
    %119 = vector.broadcast %117 : vector<1x8x32xf32> to vector<2x8x32xf32>
    %120 = arith.mulf %118, %119 : vector<2x8x32xf32>
    %121 = arith.addf %111, %120 : vector<2x8x32xf32>
    %122 = vector.extract_strided_slice %0 {offsets = [0, 0, 12], sizes = [2, 8, 1], strides = [1, 1, 1]} : vector<2x8x16xf32> to vector<2x8x1xf32>
    %123 = vector.shape_cast %122 : vector<2x8x1xf32> to vector<2x8xf32>
    %124 = vector.shape_cast %123 : vector<2x8xf32> to vector<2x8x1xf32>
    %125 = vector.extract_strided_slice %2 {offsets = [0, 12, 0], sizes = [8, 1, 32], strides = [1, 1, 1]} : vector<8x16x32xf32> to vector<8x1x32xf32>
    %126 = vector.shape_cast %125 : vector<8x1x32xf32> to vector<8x32xf32>
    %127 = vector.shape_cast %126 : vector<8x32xf32> to vector<1x8x32xf32>
    %128 = vector.broadcast %124 : vector<2x8x1xf32> to vector<2x8x32xf32>
    %129 = vector.broadcast %127 : vector<1x8x32xf32> to vector<2x8x32xf32>
    %130 = arith.mulf %128, %129 : vector<2x8x32xf32>
    %131 = arith.addf %121, %130 : vector<2x8x32xf32>
    %132 = vector.extract_strided_slice %0 {offsets = [0, 0, 13], sizes = [2, 8, 1], strides = [1, 1, 1]} : vector<2x8x16xf32> to vector<2x8x1xf32>
    %133 = vector.shape_cast %132 : vector<2x8x1xf32> to vector<2x8xf32>
    %134 = vector.shape_cast %133 : vector<2x8xf32> to vector<2x8x1xf32>
    %135 = vector.extract_strided_slice %2 {offsets = [0, 13, 0], sizes = [8, 1, 32], strides = [1, 1, 1]} : vector<8x16x32xf32> to vector<8x1x32xf32>
    %136 = vector.shape_cast %135 : vector<8x1x32xf32> to vector<8x32xf32>
    %137 = vector.shape_cast %136 : vector<8x32xf32> to vector<1x8x32xf32>
    %138 = vector.broadcast %134 : vector<2x8x1xf32> to vector<2x8x32xf32>
    %139 = vector.broadcast %137 : vector<1x8x32xf32> to vector<2x8x32xf32>
    %140 = arith.mulf %138, %139 : vector<2x8x32xf32>
    %141 = arith.addf %131, %140 : vector<2x8x32xf32>
    %142 = vector.extract_strided_slice %0 {offsets = [0, 0, 14], sizes = [2, 8, 1], strides = [1, 1, 1]} : vector<2x8x16xf32> to vector<2x8x1xf32>
    %143 = vector.shape_cast %142 : vector<2x8x1xf32> to vector<2x8xf32>
    %144 = vector.shape_cast %143 : vector<2x8xf32> to vector<2x8x1xf32>
    %145 = vector.extract_strided_slice %2 {offsets = [0, 14, 0], sizes = [8, 1, 32], strides = [1, 1, 1]} : vector<8x16x32xf32> to vector<8x1x32xf32>
    %146 = vector.shape_cast %145 : vector<8x1x32xf32> to vector<8x32xf32>
    %147 = vector.shape_cast %146 : vector<8x32xf32> to vector<1x8x32xf32>
    %148 = vector.broadcast %144 : vector<2x8x1xf32> to vector<2x8x32xf32>
    %149 = vector.broadcast %147 : vector<1x8x32xf32> to vector<2x8x32xf32>
    %150 = arith.mulf %148, %149 : vector<2x8x32xf32>
    %151 = arith.addf %141, %150 : vector<2x8x32xf32>
    %152 = vector.extract_strided_slice %0 {offsets = [0, 0, 15], sizes = [2, 8, 1], strides = [1, 1, 1]} : vector<2x8x16xf32> to vector<2x8x1xf32>
    %153 = vector.shape_cast %152 : vector<2x8x1xf32> to vector<2x8xf32>
    %154 = vector.shape_cast %153 : vector<2x8xf32> to vector<2x8x1xf32>
    %155 = vector.extract_strided_slice %2 {offsets = [0, 15, 0], sizes = [8, 1, 32], strides = [1, 1, 1]} : vector<8x16x32xf32> to vector<8x1x32xf32>
    %156 = vector.shape_cast %155 : vector<8x1x32xf32> to vector<8x32xf32>
    %157 = vector.shape_cast %156 : vector<8x32xf32> to vector<1x8x32xf32>
    %158 = vector.broadcast %154 : vector<2x8x1xf32> to vector<2x8x32xf32>
    %159 = vector.broadcast %157 : vector<1x8x32xf32> to vector<2x8x32xf32>
    %160 = arith.mulf %158, %159 : vector<2x8x32xf32>
    %161 = arith.addf %151, %160 : vector<2x8x32xf32>
    %cst = arith.constant dense<0.000000e+00> : vector<2x32xf32>
    %162 = vector.multi_reduction <add>, %161, %cst [1] : vector<2x8x32xf32> to vector<2x32xf32>
    %cst_6 = arith.constant 1.250000e-01 : f32
    %163 = vector.broadcast %cst_6 : f32 to vector<2x32xf32>
    %164 = arith.mulf %162, %163 : vector<2x32xf32>
    %165 = arith.mulf %164, %164 : vector<2x32xf32>
    %cst_7 = arith.constant dense<0.000000e+00> : vector<2xf32>
    %166 = vector.multi_reduction <add>, %165, %cst_7 [1] : vector<2x32xf32> to vector<2xf32>
    %167 = vector.shape_cast %166 : vector<2xf32> to vector<2x1xf32>
    %168 = math.sqrt %167 : vector<2x1xf32>
    %cst_8 = arith.constant 1.000000e+00 : f32
    %169 = vector.broadcast %cst_8 : f32 to vector<2x1xf32>
    %170 = arith.addf %169, %167 : vector<2x1xf32>
    %171 = arith.divf %168, %170 : vector<2x1xf32>
    %172 = vector.broadcast %171 : vector<2x1xf32> to vector<2x32xf32>
    %173 = arith.mulf %164, %172 : vector<2x32xf32>
    %cst_9 = arith.constant 0.000000e+00 : f32
    %174 = vector.broadcast %cst_9 : f32 to vector<2x8xf32>
    %175 = vector.shape_cast %173 : vector<2x32xf32> to vector<2x1x32xf32>
    %176 = vector.broadcast %175 : vector<2x1x32xf32> to vector<2x8x32xf32>
    %177 = arith.mulf %161, %176 : vector<2x8x32xf32>
    %cst_10 = arith.constant dense<0.000000e+00> : vector<2x8xf32>
    %178 = vector.multi_reduction <add>, %177, %cst_10 [2] : vector<2x8x32xf32> to vector<2x8xf32>
    %179 = arith.addf %174, %178 : vector<2x8xf32>
    %cst_11 = arith.constant dense<0xFF800000> : vector<2xf32>
    %180 = vector.multi_reduction <maximumf>, %179, %cst_11 [1] : vector<2x8xf32> to vector<2xf32>
    %181 = vector.shape_cast %180 : vector<2xf32> to vector<2x1xf32>
    %182 = vector.broadcast %181 : vector<2x1xf32> to vector<2x8xf32>
    %183 = arith.subf %179, %182 : vector<2x8xf32>
    %184 = math.exp %183 : vector<2x8xf32>
    %cst_12 = arith.constant dense<0.000000e+00> : vector<2xf32>
    %185 = vector.multi_reduction <add>, %184, %cst_12 [1] : vector<2x8xf32> to vector<2xf32>
    %186 = vector.shape_cast %185 : vector<2xf32> to vector<2x1xf32>
    %187 = vector.broadcast %186 : vector<2x1xf32> to vector<2x8xf32>
    %188 = arith.divf %184, %187 : vector<2x8xf32>
    %189 = vector.shape_cast %188 : vector<2x8xf32> to vector<2x8x1xf32>
    %190 = vector.broadcast %189 : vector<2x8x1xf32> to vector<2x8x32xf32>
    %191 = arith.mulf %161, %190 : vector<2x8x32xf32>
    %cst_13 = arith.constant dense<0.000000e+00> : vector<2x32xf32>
    %192 = vector.multi_reduction <add>, %191, %cst_13 [1] : vector<2x8x32xf32> to vector<2x32xf32>
    %193 = arith.mulf %192, %192 : vector<2x32xf32>
    %cst_14 = arith.constant dense<0.000000e+00> : vector<2xf32>
    %194 = vector.multi_reduction <add>, %193, %cst_14 [1] : vector<2x32xf32> to vector<2xf32>
    %195 = vector.shape_cast %194 : vector<2xf32> to vector<2x1xf32>
    %196 = math.sqrt %195 : vector<2x1xf32>
    %cst_15 = arith.constant 1.000000e+00 : f32
    %197 = vector.broadcast %cst_15 : f32 to vector<2x1xf32>
    %198 = arith.addf %197, %195 : vector<2x1xf32>
    %199 = arith.divf %196, %198 : vector<2x1xf32>
    %200 = vector.broadcast %199 : vector<2x1xf32> to vector<2x32xf32>
    %201 = arith.mulf %192, %200 : vector<2x32xf32>
    %c0_16 = arith.constant 0 : index
    %c0_17 = arith.constant 0 : index
    %c0_18 = arith.constant 0 : index
    %202 = vector.load %arg4[%c0_16, %c0_17, %c0_18] : memref<1x2x32xf32, #tpu.memory_space<vmem>>, vector<1x2x32xf32>
    %203 = vector.shape_cast %202 : vector<1x2x32xf32> to vector<2x32xf32>
    %204 = vector.shape_cast %201 : vector<2x32xf32> to vector<1x2x32xf32>
    tpu.vector_store %arg4[%c0_16, %c0_17, %c0_18], %204 {strides = array<i32>} : memref<1x2x32xf32, #tpu.memory_space<vmem>>, vector<1x2x32xf32>,
    return
  }
  func.func @transform_0(%arg0: i32, %arg1: i32) -> (i32, i32, i32) {
    %c0_i32 = arith.constant 0 : i32
    %c0_i32_0 = arith.constant 0 : i32
    %c0_i32_1 = arith.constant 0 : i32
    return %arg0, %c0_i32, %c0_i32_0 : i32, i32, i32
  }
  func.func @transform_1(%arg0: i32, %arg1: i32) -> (i32, i32, i32, i32) {
    %c0_i32 = arith.constant 0 : i32
    %c0_i32_0 = arith.constant 0 : i32
    %c0_i32_1 = arith.constant 0 : i32
    %c0_i32_2 = arith.constant 0 : i32
    return %arg1, %c0_i32, %c0_i32_0, %c0_i32_1 : i32, i32, i32, i32
  }
  func.func @transform_2(%arg0: i32, %arg1: i32) -> (i32, i32, i32) {
    %c0_i32 = arith.constant 0 : i32
    %c0_i32_0 = arith.constant 0 : i32
    return %arg1, %arg0, %c0_i32 : i32, i32, i32
  }
}

</mosaic_0001>

<llo_original>
// kernel: tpu_custom_call.1
$region0: #{tpu_custom_call.1}
  #allocation0 [shape = 'u32[]', space=smem, size = 0x4, offset = 0x4, fixed_abs, tag = 'smem constant byte address 0x4 - core index']
  #allocation1 [shape = 'u32[72,128]{1,0:T(1,128)}', space=vmem, size = 0x9000, scoped, tag = 'internal scratch']
  %s0 = inlined_call_operand.hbm [shape: f32[2,8,16], index: 0, kind: input, shape index: {}]
  %s1 = inlined_call_operand.hbm [shape: f32[4,8,16,32], index: 1, kind: input, shape index: {}]
  %s2 = inlined_call_operand.hbm [shape: f32[4,2,32], index: 2, kind: output, shape index: {}]
  %s3 = sld [smem:[#allocation0]]
  $region49: #{tpu_custom_call.1} parent=0
    _
  %s5 = ssub.s32 1, %s3
  %s6 = scalar_select 0, %s5, %s3
  $region1: #{tpu_custom_call.1} parent=0
    #allocation2 [shape = 'u8[8192]{0}', space=vmem, size = 0x2000, scoped, tag = 'input window, operand 0, single buffered']
    #allocation3 [shape = 's32[2]{0}', space=sflag, size = 0x8, scoped, tag = 'scoped memory for tpu_custom_call.1']
    #allocation4 [shape = 's32[2]{0}', space=sflag, size = 0x8, scoped, tag = 'scoped memory for tpu_custom_call.1']
    #allocation5 [shape = 'u8[131072]{0}', space=vmem, size = 0x20000, scoped, tag = 'input window, operand 1']
    #allocation6 [shape = 's32[2]{0}', space=sflag, size = 0x8, scoped, tag = 'scoped memory for tpu_custom_call.1']
    #allocation7 [shape = 'u8[2048]{0}', space=vmem, size = 0x800, scoped, tag = 'output window, operand 0']
    %7 = vsyncpa [#allocation3], 0
    %8 = vsyncpa [#allocation6], 0
    %s9 = scalar_lea.sflag [#allocation6], 1
    %10 = vsyncpa %s9, 0
    %11 = vsyncpa [#allocation4], 0
    %s12 = scalar_lea.sflag [#allocation4], 1
    %13 = vsyncpa %s12, 0
    loop: start=0, step=1, limit=6
    $region2: #{tpu_custom_call.1} parent=1 // loop_pre_header
      _
    $region3: #{tpu_custom_call.1} parent=1 // loop_header
      %s15 = sphi 0, %s19
      %p16 = scmp.ge.s32.totalorder %s15, 6
      %s22 = sphi 0, %s34
      %s23 = sphi 0, %s30
      %s24 = sphi 0, %s22
      %s25 = sphi 0, %s23
      %s26 = sphi 0, %s24
      %s27 = sphi 0, %s25
      %s37 = sphi 0, %s39
      %s40 = sphi 0, %s37
      %s41 = sphi 0, %s40
      %s57 = sphi 0, %s41
      %s63 = sphi 0, %s65
      %s66 = sphi 0, %s63
      %s67 = sphi 0, %s66
      %s83 = sphi 0, %s67
      %s91 = sphi 0, %s93
      %s94 = sphi 0, %s91
      %s95 = sphi 0, %s94
      %s111 = sphi 0, %s95
    $region4: #{tpu_custom_call.1} parent=1 // loop_header_branch
      %18 = sbr.rel (%p16) target = $region8
    $region5: #{tpu_custom_call.1} parent=1 // loop_body
      %s20 = ssub.s32 %s15, 1
      %s21 = ssub.s32 %s15, 2
      %s28 = sadd.s32 1, %s23
      %p29 = scmp.ge.s32.totalorder %s28, 4
      %s30 = scalar_select %p29, 0, %s28
      %s31 = sadd.s32 1, %s22
      %s32 = scalar_select %p29, %s31, %s22
      %p33 = scmp.ge.s32.totalorder %s32, 1
      %s34 = scalar_select %p33, 0, %s32
      %s35 = ssub.s32 %s22, %s34
      %p36 = scmp.eq.s32.totalorder %s35, 0
      %s38 = sadd.s32 %s37, 1
      %s39 = scalar_select %p36, %s37, %s38
      %p42 = pneg %p36
      %p43 = scmp.eq.s32.totalorder %s15, 3
      %p44 = por %p42, %p43
      %p45 = scmp.ne.s32.totalorder %s37, %s40
      %p46 = scmp.eq.s32.totalorder %s15, 0
      %p47 = por %p45, %p46
      %p48 = scmp.ne.s32.totalorder %s37, %s40
      %p49 = scmp.eq.s32.totalorder %s20, 3
      %p50 = por %p48, %p49
      %p51 = scmp.ne.s32.totalorder %s40, %s41
      %p52 = scmp.eq.s32.totalorder %s20, 0
      %p53 = por %p51, %p52
      %p54 = scmp.ne.s32.totalorder %s40, %s41
      %p55 = scmp.eq.s32.totalorder %s21, 3
      %p56 = por %p54, %p55
      %p58 = scmp.ne.s32.totalorder %s41, %s57
      %p59 = scmp.eq.s32.totalorder %s21, 0
      %p60 = por %p58, %p59
      %s61 = ssub.s32 %s23, %s30
      %p62 = scmp.eq.s32.totalorder %s61, 0
      %s64 = sadd.s32 %s63, 1
      %s65 = scalar_select %p62, %s63, %s64
      %p68 = pneg %p62
      %p69 = scmp.eq.s32.totalorder %s15, 3
      %p70 = por %p68, %p69
      %p71 = scmp.ne.s32.totalorder %s63, %s66
      %p72 = scmp.eq.s32.totalorder %s15, 0
      %p73 = por %p71, %p72
      %p74 = scmp.ne.s32.totalorder %s63, %s66
      %p75 = scmp.eq.s32.totalorder %s20, 3
      %p76 = por %p74, %p75
      %p77 = scmp.ne.s32.totalorder %s66, %s67
      %p78 = scmp.eq.s32.totalorder %s20, 0
      %p79 = por %p77, %p78
      %p80 = scmp.ne.s32.totalorder %s66, %s67
      %p81 = scmp.eq.s32.totalorder %s21, 3
      %p82 = por %p80, %p81
      %p84 = scmp.ne.s32.totalorder %s67, %s83
      %p85 = scmp.eq.s32.totalorder %s21, 0
      %p86 = por %p84, %p85
      %s87 = ssub.s32 %s23, %s30
      %s88 = ssub.s32 %s22, %s34
      %s89 = sor.u32 %s87, %s88
      %p90 = scmp.eq.s32.totalorder %s89, 0
      %s92 = sadd.s32 %s91, 1
      %s93 = scalar_select %p90, %s91, %s92
      %p96 = pneg %p90
      %p97 = scmp.eq.s32.totalorder %s15, 3
      %p98 = por %p96, %p97
      %p99 = scmp.ne.s32.totalorder %s91, %s94
      %p100 = scmp.eq.s32.totalorder %s15, 0
      %p101 = por %p99, %p100
      %p102 = scmp.ne.s32.totalorder %s91, %s94
      %p103 = scmp.eq.s32.totalorder %s20, 3
      %p104 = por %p102, %p103
      %p105 = scmp.ne.s32.totalorder %s94, %s95
      %p106 = scmp.eq.s32.totalorder %s20, 0
      %p107 = por %p105, %p106
      %p108 = scmp.ne.s32.totalorder %s94, %s95
      %p109 = scmp.eq.s32.totalorder %s21, 3
      %p110 = por %p108, %p109
      %p112 = scmp.ne.s32.totalorder %s95, %s111
      %p113 = scmp.eq.s32.totalorder %s21, 0
      %p114 = por %p112, %p113
      %p115 = scmp.le.s32.totalorder 1, %s15
      %p116 = scmp.lt.s32.totalorder %s15, 5
      %p117 = pnand %p115, %p116
      %p118 = pneg %p117
      // Predicated region
      $region9: #{tpu_custom_call.1} parent=5 // pred_check
        _
      $region10: #{tpu_custom_call.1} parent=5 // pred_check_branch
        %120 = sbr.rel (%p117) target = $region12
      $region11: #{tpu_custom_call.1} parent=5 // pred_region
        %s121 = ssub.s32 %s15, 1
        // Predicated region
        $region13: #{tpu_custom_call.1} parent=11 // pred_check
          %p122 = pneg %p53
        $region14: #{tpu_custom_call.1} parent=11 // pred_check_branch
          %124 = sbr.rel (%p122) target = $region16
        $region15: #{tpu_custom_call.1} parent=11 // pred_region
          %s125 = smul.u32 2, %s24
          %127 = vsyncadd [#allocation3], 0
          %s128 = smul.addr %s125, 8
          %s129 = scalar_lea.hbm %s0, %s128
          %s130 = sshll.u32 %s129, 4
          %s131 = int_to_ptr.hbm [resolvable:$true] %s130
          %s132 = sshll.u32 [#allocation2], 4
          %s133 = int_to_ptr.vmem [resolvable:$true] %s132
          %138 = dma.hbm_to_vmem [thread:$0]  %s131, 256, %s133, [#allocation3], 128, 128, 8
        $region16: #{tpu_custom_call.1} parent=11 // pred_fallthru
          _
      $region12: #{tpu_custom_call.1} parent=5 // pred_fallthru
        _
      %p139 = scmp.lt.s32.totalorder %s15, 4
      // Predicated region
      $region17: #{tpu_custom_call.1} parent=5 // pred_check
        %p140 = pneg %p139
      $region18: #{tpu_custom_call.1} parent=5 // pred_check_branch
        %142 = sbr.rel (%p140) target = $region20
      $region19: #{tpu_custom_call.1} parent=5 // pred_region
        // Predicated region
        $region21: #{tpu_custom_call.1} parent=19 // pred_check
          %p143 = pneg %p73
        $region22: #{tpu_custom_call.1} parent=19 // pred_check_branch
          %145 = sbr.rel (%p143) target = $region24
        $region23: #{tpu_custom_call.1} parent=19 // pred_region
          %s146 = sand.u32 %s63, 1
          %s147 = scalar_lea.sflag [#allocation6], %s146
          %s148 = sand.u32 %s63, 1
          %s149 = smul.addr %s148, 128
          %s150 = scalar_lea.vmem [#allocation5], %s149
          %152 = vsyncadd %s147, 0
          %s153 = smul.addr %s23, 16
          %s154 = smul.addr %s153, 8
          %s155 = scalar_lea.hbm %s1, %s154
          %s156 = sshll.u32 %s155, 4
          %s157 = int_to_ptr.hbm [resolvable:$true] %s156
          %s158 = sshll.u32 %s150, 4
          %s159 = int_to_ptr.vmem [resolvable:$true] %s158
          %164 = dma.hbm_to_vmem [thread:$0]  %s157, 2048, %s159, %s147, 128, 128, 8
        $region24: #{tpu_custom_call.1} parent=19 // pred_fallthru
          _
      $region20: #{tpu_custom_call.1} parent=5 // pred_fallthru
        _
      %p165 = scmp.le.s32.totalorder 1, %s15
      %p166 = scmp.lt.s32.totalorder %s15, 5
      %p167 = pnand %p165, %p166
      %p168 = pneg %p167
      // Predicated region
      $region25: #{tpu_custom_call.1} parent=5 // pred_check
        _
      $region26: #{tpu_custom_call.1} parent=5 // pred_check_branch
        %170 = sbr.rel (%p167) target = $region28
      $region27: #{tpu_custom_call.1} parent=5 // pred_region
        %s171 = ssub.s32 %s15, 1
        // Predicated region
        $region29: #{tpu_custom_call.1} parent=27 // pred_check
          %p172 = pneg %p53
        $region30: #{tpu_custom_call.1} parent=27 // pred_check_branch
          %174 = sbr.rel (%p172) target = $region32
        $region31: #{tpu_custom_call.1} parent=27 // pred_region
          %176 = dma.done [#allocation3], 256
        $region32: #{tpu_custom_call.1} parent=27 // pred_fallthru
          _
        %s177 = sand.u32 %s66, 1
        %s178 = scalar_lea.sflag [#allocation6], %s177
        %s179 = sand.u32 %s66, 1
        %s180 = smul.addr %s179, 128
        %s181 = scalar_lea.vmem [#allocation5], %s180
        // Predicated region
        $region33: #{tpu_custom_call.1} parent=27 // pred_check
          %p182 = pneg %p79
        $region34: #{tpu_custom_call.1} parent=27 // pred_check_branch
          %184 = sbr.rel (%p182) target = $region36
        $region35: #{tpu_custom_call.1} parent=27 // pred_region
          %186 = dma.done %s178, 2048
        $region36: #{tpu_custom_call.1} parent=27 // pred_fallthru
          _
        %p187 = pneg %p53
        %p188 = pneg %p50
        %s189 = sand.u32 %s66, 1
        %s190 = scalar_lea.sflag [#allocation6], %s189
        %s191 = sand.u32 %s66, 1
        %s192 = smul.addr %s191, 128
        %s193 = scalar_lea.vmem [#allocation5], %s192
        %p194 = pneg %p79
        %p195 = pneg %p76
        %p196 = pneg %p107
        %p197 = pneg %p104
        %s198 = sand.u32 %s94, 1
        %s199 = scalar_lea.sflag [#allocation4], %s198
        %s200 = sand.u32 %s94, 1
        %s201 = smul.addr %s200, 2
        %s202 = scalar_lea.vmem [#allocation7], %s201
        %s203 = smul.u32 2, %s24
        %v204 = vld [vmem:[#allocation2] sm:$0xff]
        %v205 = vld [vmem:[#allocation2 + $0x8] sm:$0xff]
        %v206 = vld [vmem:[%s181] sm:$0xff]
        %v207 = vld [vmem:[%s181 + $0x8] sm:$0xff]
        %v208 = vld [vmem:[%s181 + $0x10] sm:$0xff]
        %v209 = vld [vmem:[%s181 + $0x18] sm:$0xff]
        %v210 = vld [vmem:[%s181 + $0x20] sm:$0xff]
        %v211 = vld [vmem:[%s181 + $0x28] sm:$0xff]
        %v212 = vld [vmem:[%s181 + $0x30] sm:$0xff]
        %v213 = vld [vmem:[%s181 + $0x38] sm:$0xff]
        %v214 = vld [vmem:[%s181 + $0x40] sm:$0xff]
        %v215 = vld [vmem:[%s181 + $0x48] sm:$0xff]
        %v216 = vld [vmem:[%s181 + $0x50] sm:$0xff]
        %v217 = vld [vmem:[%s181 + $0x58] sm:$0xff]
        %v218 = vld [vmem:[%s181 + $0x60] sm:$0xff]
        %v219 = vld [vmem:[%s181 + $0x68] sm:$0xff]
        %v220 = vld [vmem:[%s181 + $0x70] sm:$0xff]
        %v221 = vld [vmem:[%s181 + $0x78] sm:$0xff]
        %223 = vset.pattern.permute.xlu0 0
        %224 = vperm.xlu0 %223, %v204
        %v225 = vpop.permute.xlu0 %224
        %228 = vset.pattern.permute.xlu0 0
        %229 = vperm.xlu0 %228, %v205
        %v230 = vpop.permute.xlu0 %229
        %v240 = vrot.slane %v208, 7
        %vm241 = vcmask 1041409
        %v242 = vsel %vm241, %v240, %v206
        %v243 = vrot.slane %v210, 6
        %vm244 = vcmask 1042434
        %v245 = vsel %vm244, %v243, %v242
        %v246 = vrot.slane %v212, 5
        %vm247 = vcmask 1043459
        %v248 = vsel %vm247, %v246, %v245
        %v249 = vrot.slane %v214, 4
        %vm250 = vcmask 1044484
        %v251 = vsel %vm250, %v249, %v248
        %v252 = vrot.slane %v216, 3
        %vm253 = vcmask 1045509
        %v254 = vsel %vm253, %v252, %v251
        %v255 = vrot.slane %v218, 2
        %vm256 = vcmask 1046534
        %v257 = vsel %vm256, %v255, %v254
        %v258 = vrot.slane %v220, 1
        %vm259 = vcmask 1047559
        %v260 = vsel %vm259, %v258, %v257
        %v262 = vmul.f32 %v225, %v260
        %v263 = vmul.f32 %v230, %v260
        %264 = vset.pattern.permute.xlu0 1
        %265 = vperm.xlu0 %264, %v204
        %v266 = vpop.permute.xlu0 %265
        %268 = vset.pattern.permute.xlu0 1
        %269 = vperm.xlu0 %268, %v205
        %v270 = vpop.permute.xlu0 %269
        %v272 = vrot.slane %v206, 1
        %v273 = vsel %vm241, %v208, %v272
        %v274 = vrot.slane %v210, 7
        %v275 = vsel %vm244, %v274, %v273
        %v276 = vrot.slane %v212, 6
        %v277 = vsel %vm247, %v276, %v275
        %v278 = vrot.slane %v214, 5
        %v279 = vsel %vm250, %v278, %v277
        %v280 = vrot.slane %v216, 4
        %v281 = vsel %vm253, %v280, %v279
        %v282 = vrot.slane %v218, 3
        %v283 = vsel %vm256, %v282, %v281
        %v284 = vrot.slane %v220, 2
        %v285 = vsel %vm259, %v284, %v283
        %v287 = vmul.f32 %v266, %v285
        %v288 = vmul.f32 %v270, %v285
        %v289 = vadd.f32 %v262, %v287
        %v290 = vadd.f32 %v263, %v288
        %291 = vset.pattern.permute.xlu0 2
        %292 = vperm.xlu0 %291, %v204
        %v293 = vpop.permute.xlu0 %292
        %295 = vset.pattern.permute.xlu0 2
        %296 = vperm.xlu0 %295, %v205
        %v297 = vpop.permute.xlu0 %296
        %v299 = vrot.slane %v206, 2
        %v300 = vrot.slane %v208, 1
        %v301 = vsel %vm241, %v300, %v299
        %v302 = vsel %vm244, %v210, %v301
        %v303 = vrot.slane %v212, 7
        %v304 = vsel %vm247, %v303, %v302
        %v305 = vrot.slane %v214, 6
        %v306 = vsel %vm250, %v305, %v304
        %v307 = vrot.slane %v216, 5
        %v308 = vsel %vm253, %v307, %v306
        %v309 = vrot.slane %v218, 4
        %v310 = vsel %vm256, %v309, %v308
        %v311 = vrot.slane %v220, 3
        %v312 = vsel %vm259, %v311, %v310
        %v314 = vmul.f32 %v293, %v312
        %v315 = vmul.f32 %v297, %v312
        %v316 = vadd.f32 %v289, %v314
        %v317 = vadd.f32 %v290, %v315
        %318 = vset.pattern.permute.xlu0 3
        %319 = vperm.xlu0 %318, %v204
        %v320 = vpop.permute.xlu0 %319
        %322 = vset.pattern.permute.xlu0 3
        %323 = vperm.xlu0 %322, %v205
        %v324 = vpop.permute.xlu0 %323
        %v326 = vrot.slane %v206, 3
        %v327 = vrot.slane %v208, 2
        %v328 = vsel %vm241, %v327, %v326
        %v329 = vrot.slane %v210, 1
        %v330 = vsel %vm244, %v329, %v328
        %v331 = vsel %vm247, %v212, %v330
        %v332 = vrot.slane %v214, 7
        %v333 = vsel %vm250, %v332, %v331
        %v334 = vrot.slane %v216, 6
        %v335 = vsel %vm253, %v334, %v333
        %v336 = vrot.slane %v218, 5
        %v337 = vsel %vm256, %v336, %v335
        %v338 = vrot.slane %v220, 4
        %v339 = vsel %vm259, %v338, %v337
        %v341 = vmul.f32 %v320, %v339
        %v342 = vmul.f32 %v324, %v339
        %v343 = vadd.f32 %v316, %v341
        %v344 = vadd.f32 %v317, %v342
        %345 = vset.pattern.permute.xlu0 4
        %346 = vperm.xlu0 %345, %v204
        %v347 = vpop.permute.xlu0 %346
        %349 = vset.pattern.permute.xlu0 4
        %350 = vperm.xlu0 %349, %v205
        %v351 = vpop.permute.xlu0 %350
        %v353 = vrot.slane %v206, 4
        %v354 = vrot.slane %v208, 3
        %v355 = vsel %vm241, %v354, %v353
        %v356 = vrot.slane %v210, 2
        %v357 = vsel %vm244, %v356, %v355
        %v358 = vrot.slane %v212, 1
        %v359 = vsel %vm247, %v358, %v357
        %v360 = vsel %vm250, %v214, %v359
        %v361 = vrot.slane %v216, 7
        %v362 = vsel %vm253, %v361, %v360
        %v363 = vrot.slane %v218, 6
        %v364 = vsel %vm256, %v363, %v362
        %v365 = vrot.slane %v220, 5
        %v366 = vsel %vm259, %v365, %v364
        %v368 = vmul.f32 %v347, %v366
        %v369 = vmul.f32 %v351, %v366
        %v370 = vadd.f32 %v343, %v368
        %v371 = vadd.f32 %v344, %v369
        %372 = vset.pattern.permute.xlu0 5
        %373 = vperm.xlu0 %372, %v204
        %v374 = vpop.permute.xlu0 %373
        %376 = vset.pattern.permute.xlu0 5
        %377 = vperm.xlu0 %376, %v205
        %v378 = vpop.permute.xlu0 %377
        %v380 = vrot.slane %v206, 5
        %v381 = vrot.slane %v208, 4
        %v382 = vsel %vm241, %v381, %v380
        %v383 = vrot.slane %v210, 3
        %v384 = vsel %vm244, %v383, %v382
        %v385 = vrot.slane %v212, 2
        %v386 = vsel %vm247, %v385, %v384
        %v387 = vrot.slane %v214, 1
        %v388 = vsel %vm250, %v387, %v386
        %v389 = vsel %vm253, %v216, %v388
        %v390 = vrot.slane %v218, 7
        %v391 = vsel %vm256, %v390, %v389
        %v392 = vrot.slane %v220, 6
        %v393 = vsel %vm259, %v392, %v391
        %v395 = vmul.f32 %v374, %v393
        %v396 = vmul.f32 %v378, %v393
        %v397 = vadd.f32 %v370, %v395
        %v398 = vadd.f32 %v371, %v396
        %399 = vset.pattern.permute.xlu0 6
        %400 = vperm.xlu0 %399, %v204
        %v401 = vpop.permute.xlu0 %400
        %403 = vset.pattern.permute.xlu0 6
        %404 = vperm.xlu0 %403, %v205
        %v405 = vpop.permute.xlu0 %404
        %v407 = vrot.slane %v206, 6
        %v408 = vrot.slane %v208, 5
        %v409 = vsel %vm241, %v408, %v407
        %v410 = vrot.slane %v210, 4
        %v411 = vsel %vm244, %v410, %v409
        %v412 = vrot.slane %v212, 3
        %v413 = vsel %vm247, %v412, %v411
        %v414 = vrot.slane %v214, 2
        %v415 = vsel %vm250, %v414, %v413
        %v416 = vrot.slane %v216, 1
        %v417 = vsel %vm253, %v416, %v415
        %v418 = vsel %vm256, %v218, %v417
        %v419 = vrot.slane %v220, 7
        %v420 = vsel %vm259, %v419, %v418
        %v422 = vmul.f32 %v401, %v420
        %v423 = vmul.f32 %v405, %v420
        %v424 = vadd.f32 %v397, %v422
        %v425 = vadd.f32 %v398, %v423
        %426 = vset.pattern.permute.xlu0 7
        %427 = vperm.xlu0 %426, %v204
        %v428 = vpop.permute.xlu0 %427
        %430 = vset.pattern.permute.xlu0 7
        %431 = vperm.xlu0 %430, %v205
        %v432 = vpop.permute.xlu0 %431
        %v434 = vrot.slane %v206, 7
        %v435 = vrot.slane %v208, 6
        %v436 = vsel %vm241, %v435, %v434
        %v437 = vrot.slane %v210, 5
        %v438 = vsel %vm244, %v437, %v436
        %v439 = vrot.slane %v212, 4
        %v440 = vsel %vm247, %v439, %v438
        %v441 = vrot.slane %v214, 3
        %v442 = vsel %vm250, %v441, %v440
        %v443 = vrot.slane %v216, 2
        %v444 = vsel %vm253, %v443, %v442
        %v445 = vrot.slane %v218, 1
        %v446 = vsel %vm256, %v445, %v444
        %v447 = vsel %vm259, %v220, %v446
        %v449 = vmul.f32 %v428, %v447
        %v450 = vmul.f32 %v432, %v447
        %v451 = vadd.f32 %v424, %v449
        %v452 = vadd.f32 %v425, %v450
        %453 = vset.pattern.permute.xlu0 8
        %454 = vperm.xlu0 %453, %v204
        %v455 = vpop.permute.xlu0 %454
        %457 = vset.pattern.permute.xlu0 8
        %458 = vperm.xlu0 %457, %v205
        %v459 = vpop.permute.xlu0 %458
        %v469 = vrot.slane %v209, 7
        %v470 = vsel %vm241, %v469, %v207
        %v471 = vrot.slane %v211, 6
        %v472 = vsel %vm244, %v471, %v470
        %v473 = vrot.slane %v213, 5
        %v474 = vsel %vm247, %v473, %v472
        %v475 = vrot.slane %v215, 4
        %v476 = vsel %vm250, %v475, %v474
        %v477 = vrot.slane %v217, 3
        %v478 = vsel %vm253, %v477, %v476
        %v479 = vrot.slane %v219, 2
        %v480 = vsel %vm256, %v479, %v478
        %v481 = vrot.slane %v221, 1
        %v482 = vsel %vm259, %v481, %v480
        %v484 = vmul.f32 %v455, %v482
        %v485 = vmul.f32 %v459, %v482
        %v486 = vadd.f32 %v451, %v484
        %v487 = vadd.f32 %v452, %v485
        %488 = vset.pattern.permute.xlu0 9
        %489 = vperm.xlu0 %488, %v204
        %v490 = vpop.permute.xlu0 %489
        %492 = vset.pattern.permute.xlu0 9
        %493 = vperm.xlu0 %492, %v205
        %v494 = vpop.permute.xlu0 %493
        %v496 = vrot.slane %v207, 1
        %v497 = vsel %vm241, %v209, %v496
        %v498 = vrot.slane %v211, 7
        %v499 = vsel %vm244, %v498, %v497
        %v500 = vrot.slane %v213, 6
        %v501 = vsel %vm247, %v500, %v499
        %v502 = vrot.slane %v215, 5
        %v503 = vsel %vm250, %v502, %v501
        %v504 = vrot.slane %v217, 4
        %v505 = vsel %vm253, %v504, %v503
        %v506 = vrot.slane %v219, 3
        %v507 = vsel %vm256, %v506, %v505
        %v508 = vrot.slane %v221, 2
        %v509 = vsel %vm259, %v508, %v507
        %v511 = vmul.f32 %v490, %v509
        %v512 = vmul.f32 %v494, %v509
        %v513 = vadd.f32 %v486, %v511
        %v514 = vadd.f32 %v487, %v512
        %515 = vset.pattern.permute.xlu0 10
        %516 = vperm.xlu0 %515, %v204
        %v517 = vpop.permute.xlu0 %516
        %519 = vset.pattern.permute.xlu0 10
        %520 = vperm.xlu0 %519, %v205
        %v521 = vpop.permute.xlu0 %520
        %v523 = vrot.slane %v207, 2
        %v524 = vrot.slane %v209, 1
        %v525 = vsel %vm241, %v524, %v523
        %v526 = vsel %vm244, %v211, %v525
        %v527 = vrot.slane %v213, 7
        %v528 = vsel %vm247, %v527, %v526
        %v529 = vrot.slane %v215, 6
        %v530 = vsel %vm250, %v529, %v528
        %v531 = vrot.slane %v217, 5
        %v532 = vsel %vm253, %v531, %v530
        %v533 = vrot.slane %v219, 4
        %v534 = vsel %vm256, %v533, %v532
        %v535 = vrot.slane %v221, 3
        %v536 = vsel %vm259, %v535, %v534
        %v538 = vmul.f32 %v517, %v536
        %v539 = vmul.f32 %v521, %v536
        %v540 = vadd.f32 %v513, %v538
        %v541 = vadd.f32 %v514, %v539
        %542 = vset.pattern.permute.xlu0 11
        %543 = vperm.xlu0 %542, %v204
        %v544 = vpop.permute.xlu0 %543
        %546 = vset.pattern.permute.xlu0 11
        %547 = vperm.xlu0 %546, %v205
        %v548 = vpop.permute.xlu0 %547
        %v550 = vrot.slane %v207, 3
        %v551 = vrot.slane %v209, 2
        %v552 = vsel %vm241, %v551, %v550
        %v553 = vrot.slane %v211, 1
        %v554 = vsel %vm244, %v553, %v552
        %v555 = vsel %vm247, %v213, %v554
        %v556 = vrot.slane %v215, 7
        %v557 = vsel %vm250, %v556, %v555
        %v558 = vrot.slane %v217, 6
        %v559 = vsel %vm253, %v558, %v557
        %v560 = vrot.slane %v219, 5
        %v561 = vsel %vm256, %v560, %v559
        %v562 = vrot.slane %v221, 4
        %v563 = vsel %vm259, %v562, %v561
        %v565 = vmul.f32 %v544, %v563
        %v566 = vmul.f32 %v548, %v563
        %v567 = vadd.f32 %v540, %v565
        %v568 = vadd.f32 %v541, %v566
        %569 = vset.pattern.permute.xlu0 12
        %570 = vperm.xlu0 %569, %v204
        %v571 = vpop.permute.xlu0 %570
        %573 = vset.pattern.permute.xlu0 12
        %574 = vperm.xlu0 %573, %v205
        %v575 = vpop.permute.xlu0 %574
        %v577 = vrot.slane %v207, 4
        %v578 = vrot.slane %v209, 3
        %v579 = vsel %vm241, %v578, %v577
        %v580 = vrot.slane %v211, 2
        %v581 = vsel %vm244, %v580, %v579
        %v582 = vrot.slane %v213, 1
        %v583 = vsel %vm247, %v582, %v581
        %v584 = vsel %vm250, %v215, %v583
        %v585 = vrot.slane %v217, 7
        %v586 = vsel %vm253, %v585, %v584
        %v587 = vrot.slane %v219, 6
        %v588 = vsel %vm256, %v587, %v586
        %v589 = vrot.slane %v221, 5
        %v590 = vsel %vm259, %v589, %v588
        %v592 = vmul.f32 %v571, %v590
        %v593 = vmul.f32 %v575, %v590
        %v594 = vadd.f32 %v567, %v592
        %v595 = vadd.f32 %v568, %v593
        %596 = vset.pattern.permute.xlu0 13
        %597 = vperm.xlu0 %596, %v204
        %v598 = vpop.permute.xlu0 %597
        %600 = vset.pattern.permute.xlu0 13
        %601 = vperm.xlu0 %600, %v205
        %v602 = vpop.permute.xlu0 %601
        %v604 = vrot.slane %v207, 5
        %v605 = vrot.slane %v209, 4
        %v606 = vsel %vm241, %v605, %v604
        %v607 = vrot.slane %v211, 3
        %v608 = vsel %vm244, %v607, %v606
        %v609 = vrot.slane %v213, 2
        %v610 = vsel %vm247, %v609, %v608
        %v611 = vrot.slane %v215, 1
        %v612 = vsel %vm250, %v611, %v610
        %v613 = vsel %vm253, %v217, %v612
        %v614 = vrot.slane %v219, 7
        %v615 = vsel %vm256, %v614, %v613
        %v616 = vrot.slane %v221, 6
        %v617 = vsel %vm259, %v616, %v615
        %v619 = vmul.f32 %v598, %v617
        %v620 = vmul.f32 %v602, %v617
        %v621 = vadd.f32 %v594, %v619
        %v622 = vadd.f32 %v595, %v620
        %623 = vset.pattern.permute.xlu0 14
        %624 = vperm.xlu0 %623, %v204
        %v625 = vpop.permute.xlu0 %624
        %627 = vset.pattern.permute.xlu0 14
        %628 = vperm.xlu0 %627, %v205
        %v629 = vpop.permute.xlu0 %628
        %v631 = vrot.slane %v207, 6
        %v632 = vrot.slane %v209, 5
        %v633 = vsel %vm241, %v632, %v631
        %v634 = vrot.slane %v211, 4
        %v635 = vsel %vm244, %v634, %v633
        %v636 = vrot.slane %v213, 3
        %v637 = vsel %vm247, %v636, %v635
        %v638 = vrot.slane %v215, 2
        %v639 = vsel %vm250, %v638, %v637
        %v640 = vrot.slane %v217, 1
        %v641 = vsel %vm253, %v640, %v639
        %v642 = vsel %vm256, %v219, %v641
        %v643 = vrot.slane %v221, 7
        %v644 = vsel %vm259, %v643, %v642
        %v646 = vmul.f32 %v625, %v644
        %v647 = vmul.f32 %v629, %v644
        %v648 = vadd.f32 %v621, %v646
        %v649 = vadd.f32 %v622, %v647
        %650 = vset.pattern.permute.xlu0 15
        %651 = vperm.xlu0 %650, %v204
        %v652 = vpop.permute.xlu0 %651
        %654 = vset.pattern.permute.xlu0 15
        %655 = vperm.xlu0 %654, %v205
        %v656 = vpop.permute.xlu0 %655
        %v658 = vrot.slane %v207, 7
        %v659 = vrot.slane %v209, 6
        %v660 = vsel %vm241, %v659, %v658
        %v661 = vrot.slane %v211, 5
        %v662 = vsel %vm244, %v661, %v660
        %v663 = vrot.slane %v213, 4
        %v664 = vsel %vm247, %v663, %v662
        %v665 = vrot.slane %v215, 3
        %v666 = vsel %vm250, %v665, %v664
        %v667 = vrot.slane %v217, 2
        %v668 = vsel %vm253, %v667, %v666
        %v669 = vrot.slane %v219, 1
        %v670 = vsel %vm256, %v669, %v668
        %v671 = vsel %vm259, %v221, %v670
        %v673 = vmul.f32 %v652, %v671
        %v674 = vmul.f32 %v656, %v671
        %v675 = vadd.f32 %v648, %v673
        %v676 = vadd.f32 %v649, %v674
        %vm677 = vcmask 261120
        %v678 = vsel %vm677, %v675, 0.0
        %v679 = vrot.slane %v678, 4
        %v680 = vadd.f32 %v678, %v679
        %v681 = vrot.slane %v680, 2
        %v682 = vadd.f32 %v680, %v681
        %v683 = vrot.slane %v682, 1
        %v684 = vadd.f32 %v682, %v683
        %v685 = vsel %vm677, %v676, 0.0
        %v686 = vrot.slane %v685, 4
        %v687 = vadd.f32 %v685, %v686
        %v688 = vrot.slane %v687, 2
        %v689 = vadd.f32 %v687, %v688
        %v690 = vrot.slane %v689, 1
        %v691 = vadd.f32 %v689, %v690
        %v692 = vmul.f32 %v684, 0.125
        %v693 = vmul.f32 %v691, 0.125
        %v694 = vmul.f32 %v692, %v692
        %v695 = vmul.f32 %v693, %v693
        %v698 = vsel %vm241, %v695, %v694
        %vm700 = vcmask 254976
        %v701 = vsel %vm700, %v698, 0.0
        %702 = vadd.xlane.f32.xlu0 %v701
        %v703 = vpop.xlane.xlu0 %702
        %v704 = vrsqrt.pop %v703
        %v705 = vmul.f32 %v704, %v703
        %v706 = vmul.f32 %v705, %v704
        %v707 = vmul.f32 0.5, %v706
        %v708 = vsub.f32 1.5, %v707
        %v709 = vmul.f32 %v704, %v708
        %v710 = vmul.f32 %v703, %v709
        %vm711 = vcmp.eq.f32.partialorder %v703, inf
        %v712 = vsel %vm711, %v703, %v710
        %vm713 = vcmp.eq.f32.partialorder %v703, 0.0
        %v714 = vand.u32 %v703, 2147483648
        %v715 = vsel %vm713, %v714, %v712
        %v716 = vadd.f32 %v703, 1.0
        %v717 = vrcp.pop %v716
        %v718 = vmul.f32 %v716, %v717
        %v719 = vsub.f32 1.0, %v718
        %v720 = vmul.f32 %v717, %v719
        %v721 = vadd.f32 %v717, %v720
        %vm722 = vweird.f32 %v716
        %vm723 = vweird.f32 %v717
        %vm724 = vmor %vm722, %vm723
        %v725 = vsel %vm724, %v717, %v721
        %v726 = vand.u32 2147483647, %v716
        %vm727 = vcmp.eq.f32.partialorder %v726, 8.507059e+37
        %v728 = vand.u32 %v716, 2147483648
        %v729 = vor.u32 1.1754944e-38, %v728
        %v730 = vsel %vm727, %v729, %v725
        %v731 = vmul.f32 %v715, %v730
        %v733 = vrot.slane %v731, 1
        %v736 = vmul.f32 %v692, %v731
        %v737 = vmul.f32 %v693, %v733
        %v738 = vperm.slane %v736, 0
        %v739 = vperm.slane %v737, 0
        %v740 = vmul.f32 %v675, %v738
        %v741 = vmul.f32 %v676, %v739
        %v742 = vsel %vm677, %v740, 0.0
        %743 = vadd.xlane.f32.xlu0 %v742
        %v744 = vpop.xlane.xlu0 %743
        %v745 = vsel %vm677, %v741, 0.0
        %746 = vadd.xlane.f32.xlu0 %v745
        %v747 = vpop.xlane.xlu0 %746
        %v748 = vadd.f32 %v744, 0.0
        %v749 = vadd.f32 %v747, 0.0
        %v752 = vlaneseq
        %v753 = vand.u32 %v752, 127
        %v754 = vperm.slane %v748, %v753
        %v755 = vperm.slane %v749, %v753
        %v756 = vsel %vm241, %v755, %v754
        %vm758 = vcmask 58368
        %v759 = vsel %vm758, %v756, -inf
        %760 = vmax.xlane.f32.xlu0 %v759
        %v761 = vpop.xlane.xlu0 %760
        %v763 = vperm.slane %v761, 0
        %v764 = vperm.slane %v761, 1
        %v767 = vsub.f32 %v748, %v763
        %v768 = vsub.f32 %v749, %v764
        %v769 = vmul.f32 %v767, 1.442695
        %v770 = vpow.pop %v769
        %v771 = vmul.f32 %v768, 1.442695
        %v772 = vpow.pop %v771
        %775 = vset.pattern.permute.xlu0 0
        %776 = vperm.xlu0 %775, %v770
        %v777 = vpop.permute.xlu0 %776
        %778 = vset.pattern.permute.xlu0 0
        %779 = vperm.xlu0 %778, %v772
        %v780 = vpop.permute.xlu0 %779
        %v781 = vperm.slane %v777, %v753
        %v782 = vperm.slane %v780, %v753
        %v783 = vsel %vm241, %v782, %v781
        %v785 = vsel %vm758, %v783, 0.0
        %786 = vadd.xlane.f32.xlu0 %v785
        %v787 = vpop.xlane.xlu0 %786
        %v789 = vperm.slane %v787, 0
        %v790 = vperm.slane %v787, 1
        %v793 = vrcp.pop %v789
        %v794 = vmul.f32 %v789, %v793
        %v795 = vsub.f32 1.0, %v794
        %v796 = vmul.f32 %v793, %v795
        %v797 = vadd.f32 %v793, %v796
        %vm798 = vweird.f32 %v789
        %vm799 = vweird.f32 %v793
        %vm800 = vmor %vm798, %vm799
        %v801 = vsel %vm800, %v793, %v797
        %v802 = vand.u32 2147483647, %v789
        %vm803 = vcmp.eq.f32.partialorder %v802, 8.507059e+37
        %v804 = vand.u32 %v789, 2147483648
        %v805 = vor.u32 1.1754944e-38, %v804
        %v806 = vsel %vm803, %v805, %v801
        %v807 = vmul.f32 %v770, %v806
        %v808 = vrcp.pop %v790
        %v809 = vmul.f32 %v790, %v808
        %v810 = vsub.f32 1.0, %v809
        %v811 = vmul.f32 %v808, %v810
        %v812 = vadd.f32 %v808, %v811
        %vm813 = vweird.f32 %v790
        %vm814 = vweird.f32 %v808
        %vm815 = vmor %vm813, %vm814
        %v816 = vsel %vm815, %v808, %v812
        %v817 = vand.u32 2147483647, %v790
        %vm818 = vcmp.eq.f32.partialorder %v817, 8.507059e+37
        %v819 = vand.u32 %v790, 2147483648
        %v820 = vor.u32 1.1754944e-38, %v819
        %v821 = vsel %vm818, %v820, %v816
        %v822 = vmul.f32 %v772, %v821
        %824 = vset.pattern.permute.xlu0 0
        %825 = vperm.xlu0 %824, %v807
        %v826 = vpop.permute.xlu0 %825
        %829 = vset.pattern.permute.xlu0 0
        %830 = vperm.xlu0 %829, %v822
        %v831 = vpop.permute.xlu0 %830
        %v833 = vmul.f32 %v675, %v826
        %v834 = vmul.f32 %v676, %v831
        %v835 = vsel %vm677, %v833, 0.0
        %v836 = vrot.slane %v835, 4
        %v837 = vadd.f32 %v835, %v836
        %v838 = vrot.slane %v837, 2
        %v839 = vadd.f32 %v837, %v838
        %v840 = vrot.slane %v839, 1
        %v841 = vadd.f32 %v839, %v840
        %v842 = vsel %vm677, %v834, 0.0
        %v843 = vrot.slane %v842, 4
        %v844 = vadd.f32 %v842, %v843
        %v845 = vrot.slane %v844, 2
        %v846 = vadd.f32 %v844, %v845
        %v847 = vrot.slane %v846, 1
        %v848 = vadd.f32 %v846, %v847
        %v849 = vmul.f32 %v841, %v841
        %v850 = vmul.f32 %v848, %v848
        %v853 = vsel %vm241, %v850, %v849
        %v855 = vsel %vm700, %v853, 0.0
        %856 = vadd.xlane.f32.xlu0 %v855
        %v857 = vpop.xlane.xlu0 %856
        %v858 = vrsqrt.pop %v857
        %v859 = vmul.f32 %v858, %v857
        %v860 = vmul.f32 %v859, %v858
        %v861 = vmul.f32 0.5, %v860
        %v862 = vsub.f32 1.5, %v861
        %v863 = vmul.f32 %v858, %v862
        %v864 = vmul.f32 %v857, %v863
        %vm865 = vcmp.eq.f32.partialorder %v857, inf
        %v866 = vsel %vm865, %v857, %v864
        %vm867 = vcmp.eq.f32.partialorder %v857, 0.0
        %v868 = vand.u32 %v857, 2147483648
        %v869 = vsel %vm867, %v868, %v866
        %v870 = vadd.f32 %v857, 1.0
        %v871 = vrcp.pop %v870
        %v872 = vmul.f32 %v870, %v871
        %v873 = vsub.f32 1.0, %v872
        %v874 = vmul.f32 %v871, %v873
        %v875 = vadd.f32 %v871, %v874
        %vm876 = vweird.f32 %v870
        %vm877 = vweird.f32 %v871
        %vm878 = vmor %vm876, %vm877
        %v879 = vsel %vm878, %v871, %v875
        %v880 = vand.u32 2147483647, %v870
        %vm881 = vcmp.eq.f32.partialorder %v880, 8.507059e+37
        %v882 = vand.u32 %v870, 2147483648
        %v883 = vor.u32 1.1754944e-38, %v882
        %v884 = vsel %vm881, %v883, %v879
        %v885 = vmul.f32 %v869, %v884
        %v887 = vrot.slane %v885, 1
        %v890 = vmul.f32 %v841, %v885
        %v891 = vmul.f32 %v848, %v887
        %v894 = vrot.slane %v891, 7
        %v895 = vsel %vm241, %v894, %v890
        %897 = vst.msk [vmem:[%s202] sm:$0x3] %vm700, %v895
        %s898 = sand.u32 %s94, 1
        %s899 = scalar_lea.sflag [#allocation4], %s898
        %s900 = sand.u32 %s94, 1
        %s901 = smul.addr %s900, 2
        %s902 = scalar_lea.vmem [#allocation7], %s901
        // Predicated region
        $region37: #{tpu_custom_call.1} parent=27 // pred_check
          %p903 = pneg %p104
        $region38: #{tpu_custom_call.1} parent=27 // pred_check_branch
          %905 = sbr.rel (%p903) target = $region40
        $region39: #{tpu_custom_call.1} parent=27 // pred_region
          %907 = vsyncadd %s899, 0
          %s908 = sadd.s32 %s24, %s25
          %s909 = smul.addr %s908, 2
          %s910 = scalar_lea.hbm %s2, %s909
          %s912 = sshll.u32 %s902, 4
          %s913 = int_to_ptr.vmem [resolvable:$true] %s912
          %s914 = sshll.u32 %s910, 4
          %s915 = int_to_ptr.hbm [resolvable:$true] %s914
          %917 = dma.vmem_to_hbm [thread:$0]  %s913, 32, %s915, %s899
        $region40: #{tpu_custom_call.1} parent=27 // pred_fallthru
          _
      $region28: #{tpu_custom_call.1} parent=5 // pred_fallthru
        _
      %p918 = scmp.le.s32.totalorder 2, %s15
      // Predicated region
      $region41: #{tpu_custom_call.1} parent=5 // pred_check
        %p919 = pneg %p918
      $region42: #{tpu_custom_call.1} parent=5 // pred_check_branch
        %921 = sbr.rel (%p919) target = $region44
      $region43: #{tpu_custom_call.1} parent=5 // pred_region
        %s922 = ssub.s32 %s15, 2
        // Predicated region
        $region45: #{tpu_custom_call.1} parent=43 // pred_check
          %p923 = pneg %p110
        $region46: #{tpu_custom_call.1} parent=43 // pred_check_branch
          %925 = sbr.rel (%p923) target = $region48
        $region47: #{tpu_custom_call.1} parent=43 // pred_region
          %s926 = sand.u32 %s95, 1
          %s927 = scalar_lea.sflag [#allocation4], %s926
          %s928 = sand.u32 %s95, 1
          %s929 = smul.addr %s928, 2
          %s930 = scalar_lea.vmem [#allocation7], %s929
          %932 = dma.done %s927, 32
        $region48: #{tpu_custom_call.1} parent=43 // pred_fallthru
          _
      $region44: #{tpu_custom_call.1} parent=5 // pred_fallthru
        _
    $region6: #{tpu_custom_call.1} parent=1 // loop_footer
      %s19 = sadd.s32 1, %s15
    $region7: #{tpu_custom_call.1} parent=1 // loop_footer_branch
      %14 = sbr.rel target = $region3
    $region8: #{tpu_custom_call.1} parent=1 // loop_exit
      _
    %933 = vsyncpa [#allocation3], 1
    %s934 = scalar_lea.sflag [#allocation3], 1
    %935 = vsyncpa %s934, 1
    %936 = vsyncpa [#allocation6], 1
    %s937 = scalar_lea.sflag [#allocation6], 1
    %938 = vsyncpa %s937, 1
    %939 = vsyncpa [#allocation4], 1
    %s940 = scalar_lea.sflag [#allocation4], 1
    %941 = vsyncpa %s940, 1

</llo_original>
